<compile_context>
chip_gen: v7x
topology: tpu7x:2x2x1
jax: 0.10.0
libtpu: 0.0.40
codegen_flags: <defaults>
</compile_context>

<pallas_src>
import functools

import jax
import jax.numpy as jnp
from jax import lax
from jax.experimental import pallas as pl
from jax.experimental.pallas import tpu as pltpu

LANE = 128
SUBLANE = 8
MAX_TILE_ROWS = 8192  # (8192, 128) f32 tile = 4 MiB per input per buffer


def _cdiv(a, b):
    return -(-a // b)


def _round_up(a, b):
    return _cdiv(a, b) * b


def _dice_partial_kernel(pr_ref, gt_ref, out_ref, tp_acc, pr_acc, gt_acc, *,
                         rows, tile_rows, tiles_per_core, num_tiles,
                         first_masked_tile, any_masked):
    """Streams row-tiles per core; emits (tp, sum_pr, sum_gt) vreg partials."""
    c = pl.program_id(0)            # core-split index ("parallel")
    i = pl.program_id(1)            # per-core row-tile step ("arbitrary")
    t = c * tiles_per_core + i      # unclamped global row-tile index

    @pl.when(i == 0)
    def _init():
        tp_acc[...] = jnp.zeros_like(tp_acc)
        pr_acc[...] = jnp.zeros_like(pr_acc)
        gt_acc[...] = jnp.zeros_like(gt_acc)

    # Inputs travel HBM->VMEM in their native dtype; cast to f32 in-kernel.
    pr = pr_ref[...].astype(jnp.float32)
    gt = gt_ref[...].astype(jnp.float32)

    def _accumulate(p, g):
        # Layout-free fold: each (8,128) group is a native f32 tile, so the
        # leading-axis sum is pure vreg adds (no per-step XLU reduce).
        def fold(x):
            return jnp.sum(
                x.reshape(tile_rows // SUBLANE, SUBLANE, LANE), axis=0)
        tp_acc[...] += fold(g * p)
        pr_acc[...] += fold(p)
        gt_acc[...] += fold(g)

    if any_masked:
        # Fast path: full, in-range tiles (the vast majority of steps).
        @pl.when(t < first_masked_tile)
        def _fast():
            _accumulate(pr, gt)

        # Slow path: the ragged last tile and/or the clamped duplicate tile
        # produced by the 2-way core split when num_tiles is odd.
        @pl.when(t >= first_masked_tile)
        def _masked():
            row_ids = lax.broadcasted_iota(jnp.int32, (tile_rows, 1), 0)
            in_range = (t * tile_rows + row_ids) < rows
            valid = jnp.logical_and(in_range, t < num_tiles)
            _accumulate(jnp.where(valid, pr, 0.0), jnp.where(valid, gt, 0.0))
    else:
        _accumulate(pr, gt)

    @pl.when(i == pl.num_programs(1) - 1)
    def _finalize():
        out_ref[0, 0, :, :] = tp_acc[...]
        out_ref[0, 1, :, :] = pr_acc[...]
        out_ref[0, 2, :, :] = gt_acc[...]


def dice_loss(y_pr, y_gt, eps=1e-07, beta=1.0):
    """1 - f_score(y_pr, y_gt, beta, eps, threshold=None). Returns f32 scalar."""
    assert y_pr.shape == y_gt.shape
    pr_flat = y_pr.reshape(-1)
    gt_flat = y_gt.reshape(-1)

    n = pr_flat.size
    rows = n // LANE
    n_main = rows * LANE
    b2 = float(beta) * float(beta)
    eps = float(eps)

    tp = jnp.float32(0.0)
    s_pr = jnp.float32(0.0)
    s_gt = jnp.float32(0.0)

    if rows > 0:
        # Zero-copy reshape when n is a multiple of 128; otherwise the tiny
        # (<128 element) tail is handled below with plain jnp (no full pad).
        pr2d = pr_flat[:n_main].reshape(rows, LANE)
        gt2d = gt_flat[:n_main].reshape(rows, LANE)

        # tile_rows is always a multiple of 8 (ragged rows are masked).
        tile_rows = min(_round_up(rows, SUBLANE), MAX_TILE_ROWS)
        num_tiles = _cdiv(rows, tile_rows)
        n_split = 2                             # one per TensorCore on v7x
        tiles_per_core = _cdiv(num_tiles, n_split)
        ragged = (rows % tile_rows) != 0
        first_masked_tile = num_tiles - 1 if ragged else num_tiles
        any_masked = ragged or (n_split * tiles_per_core > num_tiles)

        kernel = functools.partial(
            _dice_partial_kernel,
            rows=rows,
            tile_rows=tile_rows,
            tiles_per_core=tiles_per_core,
            num_tiles=num_tiles,
            first_masked_tile=first_masked_tile,
            any_masked=any_masked,
        )

        def in_map(c, i):
            # Clamp so the (possibly) out-of-range slot of the core split
            # re-reads the last real tile; its contribution is masked to zero.
            return (jnp.minimum(c * tiles_per_core + i, num_tiles - 1), 0)

        partials = pl.pallas_call(
            kernel,
            out_shape=jax.ShapeDtypeStruct(
                (n_split, 3, SUBLANE, LANE), jnp.float32),
            grid_spec=pltpu.PrefetchScalarGridSpec(
                num_scalar_prefetch=0,
                grid=(n_split, tiles_per_core),
                in_specs=[
                    pl.BlockSpec((tile_rows, LANE), in_map),
                    pl.BlockSpec((tile_rows, LANE), in_map),
                ],
                out_specs=pl.BlockSpec(
                    (1, 3, SUBLANE, LANE), lambda c, i: (c, 0, 0, 0)),
                scratch_shapes=[
                    pltpu.VMEM((SUBLANE, LANE), jnp.float32),  # tp
                    pltpu.VMEM((SUBLANE, LANE), jnp.float32),  # sum(pr)
                    pltpu.VMEM((SUBLANE, LANE), jnp.float32),  # sum(gt)
                ],
            ),
            compiler_params=pltpu.CompilerParams(
                dimension_semantics=("parallel", "arbitrary"),
                vmem_limit_bytes=40 * 1024 * 1024,
            ),
        )(pr2d, gt2d)

        sums = jnp.sum(partials, axis=(0, 2, 3))  # combine cores + lanes
        tp = sums[0]
        s_pr = sums[1]
        s_gt = sums[2]

    tail = n - n_main
    if tail:
        pr_t = pr_flat[n_main:].astype(jnp.float32)
        gt_t = gt_flat[n_main:].astype(jnp.float32)
        tp = tp + jnp.sum(gt_t * pr_t)
        s_pr = s_pr + jnp.sum(pr_t)
        s_gt = s_gt + jnp.sum(gt_t)

    fp = s_pr - tp
    fn = s_gt - tp
    score = ((1.0 + b2) * tp + eps) / ((1.0 + b2) * tp + b2 * fn + fp + eps)
    return 1.0 - score


def _dice_loss_ref(y_pr, y_gt, eps=1e-07, beta=1.0):
    pr = y_pr.astype(jnp.float32)
    gt = y_gt.astype(jnp.float32)
    tp = jnp.sum(gt * pr)
    fp = jnp.sum(pr) - tp
    fn = jnp.sum(gt) - tp
    b2 = beta * beta
    score = ((1.0 + b2) * tp + eps) / ((1.0 + b2) * tp + b2 * fn + fp + eps)
    return 1.0 - score


if __name__ == "__main__":
    key = jax.random.PRNGKey(0)
    k1, k2 = jax.random.split(key)
    # NCHW-shaped inputs, as the PyTorch module would receive from a conv net.
    y_pr = jax.nn.sigmoid(jax.random.normal(k1, (2, 4, 16, 16), jnp.float32))
    y_gt = (jax.random.uniform(k2, (2, 4, 16, 16)) > 0.5).astype(jnp.float32)

    loss = jax.block_until_ready(dice_loss(y_pr, y_gt))
    ref = _dice_loss_ref(y_pr, y_gt)
    assert jnp.allclose(loss, ref, rtol=1e-5, atol=1e-6), (loss, ref)
    print("KERNEL_OK")
</pallas_src>

<mosaic_0001>
module attributes {stable_mosaic.version = 11 : i64} {
  func.func @_dice_partial_kernel(%arg0: i32, %arg1: i32, %arg2: memref<16x128xf32, #tpu.memory_space<vmem>>, %arg3: memref<16x128xf32, #tpu.memory_space<vmem>>, %arg4: memref<1x3x8x128xf32, #tpu.memory_space<vmem>>, %arg5: memref<8x128xf32, #tpu.memory_space<vmem>>, %arg6: memref<8x128xf32, #tpu.memory_space<vmem>>, %arg7: memref<8x128xf32, #tpu.memory_space<vmem>>) attributes {dimension_semantics = [#tpu.dimension_semantics<parallel>, #tpu.dimension_semantics<arbitrary>], iteration_bounds = array<i64: 2, 1>, scalar_prefetch = 0 : i64, scratch_operands = 3 : i64, tpu.core_type = #tpu.core_type<tc>, window_params = [{transform_indices = @transform_0, window_bounds = array<i64: 16, 128>}, {transform_indices = @transform_1, window_bounds = array<i64: 16, 128>}, {transform_indices = @transform_2, window_bounds = array<i64: 1, 3, 8, 128>}]} {
    %c1_i32 = arith.constant 1 : i32
    %0 = arith.muli %arg0, %c1_i32 : i32
    %1 = arith.addi %0, %arg1 : i32
    %c0_i32 = arith.constant 0 : i32
    %2 = arith.cmpi eq, %arg1, %c0_i32 : i32
    %3 = arith.extui %2 : i1 to i32
    %c0_i32_0 = arith.constant 0 : i32
    %4 = arith.cmpi ne, %3, %c0_i32_0 : i32
    scf.if %4 {
      %cst = arith.constant 0.000000e+00 : f32
      %16 = vector.broadcast %cst : f32 to vector<8x128xf32>
      %c0_10 = arith.constant 0 : index
      %c0_11 = arith.constant 0 : index
      %17 = vector.load %arg5[%c0_10, %c0_11] : memref<8x128xf32, #tpu.memory_space<vmem>>, vector<8x128xf32>
      tpu.vector_store %arg5[%c0_10, %c0_11], %16 {strides = array<i32>} : memref<8x128xf32, #tpu.memory_space<vmem>>, vector<8x128xf32>,
      %cst_12 = arith.constant 0.000000e+00 : f32
      %18 = vector.broadcast %cst_12 : f32 to vector<8x128xf32>
      %c0_13 = arith.constant 0 : index
      %c0_14 = arith.constant 0 : index
      %19 = vector.load %arg6[%c0_13, %c0_14] : memref<8x128xf32, #tpu.memory_space<vmem>>, vector<8x128xf32>
      tpu.vector_store %arg6[%c0_13, %c0_14], %18 {strides = array<i32>} : memref<8x128xf32, #tpu.memory_space<vmem>>, vector<8x128xf32>,
      %cst_15 = arith.constant 0.000000e+00 : f32
      %20 = vector.broadcast %cst_15 : f32 to vector<8x128xf32>
      %c0_16 = arith.constant 0 : index
      %c0_17 = arith.constant 0 : index
      %21 = vector.load %arg7[%c0_16, %c0_17] : memref<8x128xf32, #tpu.memory_space<vmem>>, vector<8x128xf32>
      tpu.vector_store %arg7[%c0_16, %c0_17], %20 {strides = array<i32>} : memref<8x128xf32, #tpu.memory_space<vmem>>, vector<8x128xf32>,
    } else {
    }
    %c0 = arith.constant 0 : index
    %c0_1 = arith.constant 0 : index
    %5 = vector.load %arg2[%c0, %c0_1] : memref<16x128xf32, #tpu.memory_space<vmem>>, vector<16x128xf32>
    %c0_2 = arith.constant 0 : index
    %c0_3 = arith.constant 0 : index
    %6 = vector.load %arg3[%c0_2, %c0_3] : memref<16x128xf32, #tpu.memory_space<vmem>>, vector<16x128xf32>
    %c1_i32_4 = arith.constant 1 : i32
    %7 = arith.cmpi slt, %1, %c1_i32_4 : i32
    %8 = arith.extui %7 : i1 to i32
    %c0_i32_5 = arith.constant 0 : i32
    %9 = arith.cmpi ne, %8, %c0_i32_5 : i32
    scf.if %9 {
      %c0_10 = arith.constant 0 : index
      %c0_11 = arith.constant 0 : index
      %16 = vector.load %arg5[%c0_10, %c0_11] : memref<8x128xf32, #tpu.memory_space<vmem>>, vector<8x128xf32>
      %17 = arith.mulf %6, %5 : vector<16x128xf32>
      %18 = vector.shape_cast %17 : vector<16x128xf32> to vector<2x8x128xf32>
      %cst = arith.constant dense<0.000000e+00> : vector<8x128xf32>
      %19 = vector.multi_reduction <add>, %18, %cst [0] : vector<2x8x128xf32> to vector<8x128xf32>
      %20 = arith.addf %16, %19 : vector<8x128xf32>
      %c0_12 = arith.constant 0 : index
      %c0_13 = arith.constant 0 : index
      %21 = vector.load %arg5[%c0_12, %c0_13] : memref<8x128xf32, #tpu.memory_space<vmem>>, vector<8x128xf32>
      tpu.vector_store %arg5[%c0_12, %c0_13], %20 {strides = array<i32>} : memref<8x128xf32, #tpu.memory_space<vmem>>, vector<8x128xf32>,
      %c0_14 = arith.constant 0 : index
      %c0_15 = arith.constant 0 : index
      %22 = vector.load %arg6[%c0_14, %c0_15] : memref<8x128xf32, #tpu.memory_space<vmem>>, vector<8x128xf32>
      %23 = vector.shape_cast %5 : vector<16x128xf32> to vector<2x8x128xf32>
      %cst_16 = arith.constant dense<0.000000e+00> : vector<8x128xf32>
      %24 = vector.multi_reduction <add>, %23, %cst_16 [0] : vector<2x8x128xf32> to vector<8x128xf32>
      %25 = arith.addf %22, %24 : vector<8x128xf32>
      %c0_17 = arith.constant 0 : index
      %c0_18 = arith.constant 0 : index
      %26 = vector.load %arg6[%c0_17, %c0_18] : memref<8x128xf32, #tpu.memory_space<vmem>>, vector<8x128xf32>
      tpu.vector_store %arg6[%c0_17, %c0_18], %25 {strides = array<i32>} : memref<8x128xf32, #tpu.memory_space<vmem>>, vector<8x128xf32>,
      %c0_19 = arith.constant 0 : index
      %c0_20 = arith.constant 0 : index
      %27 = vector.load %arg7[%c0_19, %c0_20] : memref<8x128xf32, #tpu.memory_space<vmem>>, vector<8x128xf32>
      %28 = vector.shape_cast %6 : vector<16x128xf32> to vector<2x8x128xf32>
      %cst_21 = arith.constant dense<0.000000e+00> : vector<8x128xf32>
      %29 = vector.multi_reduction <add>, %28, %cst_21 [0] : vector<2x8x128xf32> to vector<8x128xf32>
      %30 = arith.addf %27, %29 : vector<8x128xf32>
      %c0_22 = arith.constant 0 : index
      %c0_23 = arith.constant 0 : index
      %31 = vector.load %arg7[%c0_22, %c0_23] : memref<8x128xf32, #tpu.memory_space<vmem>>, vector<8x128xf32>
      tpu.vector_store %arg7[%c0_22, %c0_23], %30 {strides = array<i32>} : memref<8x128xf32, #tpu.memory_space<vmem>>, vector<8x128xf32>,
    } else {
    }
    %c1_i32_6 = arith.constant 1 : i32
    %10 = arith.cmpi sge, %1, %c1_i32_6 : i32
    %11 = arith.extui %10 : i1 to i32
    %c0_i32_7 = arith.constant 0 : i32
    %12 = arith.cmpi ne, %11, %c0_i32_7 : i32
    scf.if %12 {
      %16 = tpu.iota {dimensions = array<i32: 0>} : vector<16x1xi32>
      %c16_i32 = arith.constant 16 : i32
      %17 = arith.muli %1, %c16_i32 : i32
      %18 = vector.broadcast %17 : i32 to vector<16x1xi32>
      %19 = arith.addi %18, %16 : vector<16x1xi32>
      %c16_i32_10 = arith.constant 16 : i32
      %20 = vector.broadcast %c16_i32_10 : i32 to vector<16x1xi32>
      %21 = arith.cmpi slt, %19, %20 : vector<16x1xi32>
      %c1_i32_11 = arith.constant 1 : i32
      %22 = arith.cmpi slt, %1, %c1_i32_11 : i32
      %23 = vector.broadcast %22 : i1 to vector<16x1xi1>
      %24 = arith.andi %21, %23 : vector<16x1xi1>
      %cst = arith.constant 0.000000e+00 : f32
      %25 = vector.shape_cast %24 : vector<16x1xi1> to vector<16x1xi1>
      %26 = vector.broadcast %25 : vector<16x1xi1> to vector<16x128xi1>
      %27 = vector.broadcast %cst : f32 to vector<16x128xf32>
      %28 = arith.select %26, %5, %27 : vector<16x128xi1>, vector<16x128xf32>
      %cst_12 = arith.constant 0.000000e+00 : f32
      %29 = vector.shape_cast %24 : vector<16x1xi1> to vector<16x1xi1>
      %30 = vector.broadcast %29 : vector<16x1xi1> to vector<16x128xi1>
      %31 = vector.broadcast %cst_12 : f32 to vector<16x128xf32>
      %32 = arith.select %30, %6, %31 : vector<16x128xi1>, vector<16x128xf32>
      %c0_13 = arith.constant 0 : index
      %c0_14 = arith.constant 0 : index
      %33 = vector.load %arg5[%c0_13, %c0_14] : memref<8x128xf32, #tpu.memory_space<vmem>>, vector<8x128xf32>
      %34 = arith.mulf %32, %28 : vector<16x128xf32>
      %35 = vector.shape_cast %34 : vector<16x128xf32> to vector<2x8x128xf32>
      %cst_15 = arith.constant dense<0.000000e+00> : vector<8x128xf32>
      %36 = vector.multi_reduction <add>, %35, %cst_15 [0] : vector<2x8x128xf32> to vector<8x128xf32>
      %37 = arith.addf %33, %36 : vector<8x128xf32>
      %c0_16 = arith.constant 0 : index
      %c0_17 = arith.constant 0 : index
      %38 = vector.load %arg5[%c0_16, %c0_17] : memref<8x128xf32, #tpu.memory_space<vmem>>, vector<8x128xf32>
      tpu.vector_store %arg5[%c0_16, %c0_17], %37 {strides = array<i32>} : memref<8x128xf32, #tpu.memory_space<vmem>>, vector<8x128xf32>,
      %c0_18 = arith.constant 0 : index
      %c0_19 = arith.constant 0 : index
      %39 = vector.load %arg6[%c0_18, %c0_19] : memref<8x128xf32, #tpu.memory_space<vmem>>, vector<8x128xf32>
      %40 = vector.shape_cast %28 : vector<16x128xf32> to vector<2x8x128xf32>
      %cst_20 = arith.constant dense<0.000000e+00> : vector<8x128xf32>
      %41 = vector.multi_reduction <add>, %40, %cst_20 [0] : vector<2x8x128xf32> to vector<8x128xf32>
      %42 = arith.addf %39, %41 : vector<8x128xf32>
      %c0_21 = arith.constant 0 : index
      %c0_22 = arith.constant 0 : index
      %43 = vector.load %arg6[%c0_21, %c0_22] : memref<8x128xf32, #tpu.memory_space<vmem>>, vector<8x128xf32>
      tpu.vector_store %arg6[%c0_21, %c0_22], %42 {strides = array<i32>} : memref<8x128xf32, #tpu.memory_space<vmem>>, vector<8x128xf32>,
      %c0_23 = arith.constant 0 : index
      %c0_24 = arith.constant 0 : index
      %44 = vector.load %arg7[%c0_23, %c0_24] : memref<8x128xf32, #tpu.memory_space<vmem>>, vector<8x128xf32>
      %45 = vector.shape_cast %32 : vector<16x128xf32> to vector<2x8x128xf32>
      %cst_25 = arith.constant dense<0.000000e+00> : vector<8x128xf32>
      %46 = vector.multi_reduction <add>, %45, %cst_25 [0] : vector<2x8x128xf32> to vector<8x128xf32>
      %47 = arith.addf %44, %46 : vector<8x128xf32>
      %c0_26 = arith.constant 0 : index
      %c0_27 = arith.constant 0 : index
      %48 = vector.load %arg7[%c0_26, %c0_27] : memref<8x128xf32, #tpu.memory_space<vmem>>, vector<8x128xf32>
      tpu.vector_store %arg7[%c0_26, %c0_27], %47 {strides = array<i32>} : memref<8x128xf32, #tpu.memory_space<vmem>>, vector<8x128xf32>,
    } else {
    }
    %c0_i32_8 = arith.constant 0 : i32
    %13 = arith.cmpi eq, %arg1, %c0_i32_8 : i32
    %14 = arith.extui %13 : i1 to i32
    %c0_i32_9 = arith.constant 0 : i32
    %15 = arith.cmpi ne, %14, %c0_i32_9 : i32
    scf.if %15 {
      %c0_10 = arith.constant 0 : index
      %c0_11 = arith.constant 0 : index
      %16 = vector.load %arg5[%c0_10, %c0_11] : memref<8x128xf32, #tpu.memory_space<vmem>>, vector<8x128xf32>
      %c0_12 = arith.constant 0 : index
      %c0_13 = arith.constant 0 : index
      %c0_14 = arith.constant 0 : index
      %c0_15 = arith.constant 0 : index
      %17 = vector.load %arg4[%c0_12, %c0_13, %c0_14, %c0_15] : memref<1x3x8x128xf32, #tpu.memory_space<vmem>>, vector<1x1x8x128xf32>
      %18 = vector.shape_cast %17 : vector<1x1x8x128xf32> to vector<8x128xf32>
      %19 = vector.shape_cast %16 : vector<8x128xf32> to vector<1x1x8x128xf32>
      tpu.vector_store %arg4[%c0_12, %c0_13, %c0_14, %c0_15], %19 {strides = array<i32>} : memref<1x3x8x128xf32, #tpu.memory_space<vmem>>, vector<1x1x8x128xf32>,
      %c0_16 = arith.constant 0 : index
      %c0_17 = arith.constant 0 : index
      %20 = vector.load %arg6[%c0_16, %c0_17] : memref<8x128xf32, #tpu.memory_space<vmem>>, vector<8x128xf32>
      %c0_18 = arith.constant 0 : index
      %c1 = arith.constant 1 : index
      %c0_19 = arith.constant 0 : index
      %c0_20 = arith.constant 0 : index
      %21 = vector.load %arg4[%c0_18, %c1, %c0_19, %c0_20] : memref<1x3x8x128xf32, #tpu.memory_space<vmem>>, vector<1x1x8x128xf32>
      %22 = vector.shape_cast %21 : vector<1x1x8x128xf32> to vector<8x128xf32>
      %23 = vector.shape_cast %20 : vector<8x128xf32> to vector<1x1x8x128xf32>
      tpu.vector_store %arg4[%c0_18, %c1, %c0_19, %c0_20], %23 {strides = array<i32>} : memref<1x3x8x128xf32, #tpu.memory_space<vmem>>, vector<1x1x8x128xf32>,
      %c0_21 = arith.constant 0 : index
      %c0_22 = arith.constant 0 : index
      %24 = vector.load %arg7[%c0_21, %c0_22] : memref<8x128xf32, #tpu.memory_space<vmem>>, vector<8x128xf32>
      %c0_23 = arith.constant 0 : index
      %c2 = arith.constant 2 : index
      %c0_24 = arith.constant 0 : index
      %c0_25 = arith.constant 0 : index
      %25 = vector.load %arg4[%c0_23, %c2, %c0_24, %c0_25] : memref<1x3x8x128xf32, #tpu.memory_space<vmem>>, vector<1x1x8x128xf32>
      %26 = vector.shape_cast %25 : vector<1x1x8x128xf32> to vector<8x128xf32>
      %27 = vector.shape_cast %24 : vector<8x128xf32> to vector<1x1x8x128xf32>
      tpu.vector_store %arg4[%c0_23, %c2, %c0_24, %c0_25], %27 {strides = array<i32>} : memref<1x3x8x128xf32, #tpu.memory_space<vmem>>, vector<1x1x8x128xf32>,
    } else {
    }
    return
  }
  func.func @transform_0(%arg0: i32, %arg1: i32) -> (i32, i32) {
    %c1_i32 = arith.constant 1 : i32
    %0 = arith.muli %arg0, %c1_i32 : i32
    %1 = arith.addi %0, %arg1 : i32
    %c0_i32 = arith.constant 0 : i32
    %2 = arith.minsi %1, %c0_i32 : i32
    %c0_i32_0 = arith.constant 0 : i32
    %c0_i32_1 = arith.constant 0 : i32
    return %2, %c0_i32_0 : i32, i32
  }
  func.func @transform_1(%arg0: i32, %arg1: i32) -> (i32, i32) {
    %c1_i32 = arith.constant 1 : i32
    %0 = arith.muli %arg0, %c1_i32 : i32
    %1 = arith.addi %0, %arg1 : i32
    %c0_i32 = arith.constant 0 : i32
    %2 = arith.minsi %1, %c0_i32 : i32
    %c0_i32_0 = arith.constant 0 : i32
    %c0_i32_1 = arith.constant 0 : i32
    return %2, %c0_i32_0 : i32, i32
  }
  func.func @transform_2(%arg0: i32, %arg1: i32) -> (i32, i32, i32, i32) {
    %c0_i32 = arith.constant 0 : i32
    %c0_i32_0 = arith.constant 0 : i32
    %c0_i32_1 = arith.constant 0 : i32
    %c0_i32_2 = arith.constant 0 : i32
    return %arg0, %c0_i32, %c0_i32_0, %c0_i32_1 : i32, i32, i32, i32
  }
}

</mosaic_0001>

<llo_original>
// kernel: tpu_custom_call.1
$region0: #{tpu_custom_call.1}
  #allocation0 [shape = 'u32[]', space=smem, size = 0x4, offset = 0x4, fixed_abs, tag = 'smem constant byte address 0x4 - core index']
  #allocation1 [shape = 'u32[144,128]{1,0:T(1,128)}', space=vmem, size = 0x12000, scoped, tag = 'internal scratch']
  #allocation2 [shape = 'f32[8,128]{1,0:T(8,128)}', space=vmem, size = 0x1000, scoped, tag = 'scratch operand']
  #allocation3 [shape = 'f32[8,128]{1,0:T(8,128)}', space=vmem, size = 0x1000, scoped, tag = 'scratch operand']
  #allocation4 [shape = 'f32[8,128]{1,0:T(8,128)}', space=vmem, size = 0x1000, scoped, tag = 'scratch operand']
  %s0 = inlined_call_operand.hbm [shape: f32[16,128], index: 0, kind: input, shape index: {}]
  %s1 = inlined_call_operand.hbm [shape: f32[16,128], index: 1, kind: input, shape index: {}]
  %s2 = inlined_call_operand.hbm [shape: f32[2,3,8,128], index: 2, kind: output, shape index: {}]
  %s3 = sld [smem:[#allocation0]]
  $region65: #{tpu_custom_call.1} parent=0
    _
  %s5 = ssub.s32 1, %s3
  %s6 = scalar_select 0, %s5, %s3
  $region1: #{tpu_custom_call.1} parent=0
    #allocation5 [shape = 'u8[16384]{0}', space=vmem, size = 0x4000, scoped, tag = 'input window, operand 0']
    #allocation6 [shape = 's32[2]{0}', space=sflag, size = 0x8, scoped, tag = 'scoped memory for tpu_custom_call.1']
    #allocation7 [shape = 's32[2]{0}', space=sflag, size = 0x8, scoped, tag = 'scoped memory for tpu_custom_call.1']
    #allocation8 [shape = 'u8[16384]{0}', space=vmem, size = 0x4000, scoped, tag = 'input window, operand 1']
    #allocation9 [shape = 's32[2]{0}', space=sflag, size = 0x8, scoped, tag = 'scoped memory for tpu_custom_call.1']
    #allocation10 [shape = 'u8[24576]{0}', space=vmem, size = 0x6000, scoped, tag = 'output window, operand 0']
    %7 = vsyncpa [#allocation6], 0
    %s8 = scalar_lea.sflag [#allocation6], 1
    %9 = vsyncpa %s8, 0
    %10 = vsyncpa [#allocation9], 0
    %s11 = scalar_lea.sflag [#allocation9], 1
    %12 = vsyncpa %s11, 0
    %13 = vsyncpa [#allocation7], 0
    %s14 = scalar_lea.sflag [#allocation7], 1
    %15 = vsyncpa %s14, 0
    loop: start=0, step=1, limit=4
    $region2: #{tpu_custom_call.1} parent=1 // loop_pre_header
      _
    $region3: #{tpu_custom_call.1} parent=1 // loop_header
      %s17 = sphi 0, %s21
      %p18 = scmp.ge.s32.totalorder %s17, 4
      %s24 = sphi 0, %s36
      %s25 = sphi 0, %s32
      %s26 = sphi 0, %s24
      %s27 = sphi 0, %s25
      %s28 = sphi 0, %s26
      %s29 = sphi 0, %s27
      %s45 = sphi 0, %s47
      %s48 = sphi 0, %s45
      %s49 = sphi 0, %s48
      %s65 = sphi 0, %s49
      %s77 = sphi 0, %s79
      %s80 = sphi 0, %s77
      %s81 = sphi 0, %s80
      %s97 = sphi 0, %s81
      %s103 = sphi 0, %s105
      %s106 = sphi 0, %s103
      %s107 = sphi 0, %s106
      %s123 = sphi 0, %s107
    $region4: #{tpu_custom_call.1} parent=1 // loop_header_branch
      %20 = sbr.rel (%p18) target = $region8
    $region5: #{tpu_custom_call.1} parent=1 // loop_body
      %s22 = ssub.s32 %s17, 1
      %s23 = ssub.s32 %s17, 2
      %s30 = sadd.s32 1, %s25
      %p31 = scmp.ge.s32.totalorder %s30, 1
      %s32 = scalar_select %p31, 0, %s30
      %s33 = sadd.s32 1, %s24
      %s34 = scalar_select %p31, %s33, %s24
      %p35 = scmp.ge.s32.totalorder %s34, 2
      %s36 = scalar_select %p35, 0, %s34
      %s37 = sadd.s32 %s24, %s25
      %p38 = scmp.lt.s32.totalorder %s37, 0
      %s39 = scalar_select %p38, %s37, 0
      %s40 = sadd.s32 %s36, %s32
      %p41 = scmp.lt.s32.totalorder %s40, 0
      %s42 = scalar_select %p41, %s40, 0
      %s43 = ssub.s32 %s39, %s42
      %p44 = scmp.eq.s32.totalorder %s43, 0
      %s46 = sadd.s32 %s45, 1
      %s47 = scalar_select %p44, %s45, %s46
      %p50 = pneg %p44
      %p51 = scmp.eq.s32.totalorder %s17, 1
      %p52 = por %p50, %p51
      %p53 = scmp.ne.s32.totalorder %s45, %s48
      %p54 = scmp.eq.s32.totalorder %s17, 0
      %p55 = por %p53, %p54
      %p56 = scmp.ne.s32.totalorder %s45, %s48
      %p57 = scmp.eq.s32.totalorder %s22, 1
      %p58 = por %p56, %p57
      %p59 = scmp.ne.s32.totalorder %s48, %s49
      %p60 = scmp.eq.s32.totalorder %s22, 0
      %p61 = por %p59, %p60
      %p62 = scmp.ne.s32.totalorder %s48, %s49
      %p63 = scmp.eq.s32.totalorder %s23, 1
      %p64 = por %p62, %p63
      %p66 = scmp.ne.s32.totalorder %s49, %s65
      %p67 = scmp.eq.s32.totalorder %s23, 0
      %p68 = por %p66, %p67
      %s69 = sadd.s32 %s24, %s25
      %p70 = scmp.lt.s32.totalorder %s69, 0
      %s71 = scalar_select %p70, %s69, 0
      %s72 = sadd.s32 %s36, %s32
      %p73 = scmp.lt.s32.totalorder %s72, 0
      %s74 = scalar_select %p73, %s72, 0
      %s75 = ssub.s32 %s71, %s74
      %p76 = scmp.eq.s32.totalorder %s75, 0
      %s78 = sadd.s32 %s77, 1
      %s79 = scalar_select %p76, %s77, %s78
      %p82 = pneg %p76
      %p83 = scmp.eq.s32.totalorder %s17, 1
      %p84 = por %p82, %p83
      %p85 = scmp.ne.s32.totalorder %s77, %s80
      %p86 = scmp.eq.s32.totalorder %s17, 0
      %p87 = por %p85, %p86
      %p88 = scmp.ne.s32.totalorder %s77, %s80
      %p89 = scmp.eq.s32.totalorder %s22, 1
      %p90 = por %p88, %p89
      %p91 = scmp.ne.s32.totalorder %s80, %s81
      %p92 = scmp.eq.s32.totalorder %s22, 0
      %p93 = por %p91, %p92
      %p94 = scmp.ne.s32.totalorder %s80, %s81
      %p95 = scmp.eq.s32.totalorder %s23, 1
      %p96 = por %p94, %p95
      %p98 = scmp.ne.s32.totalorder %s81, %s97
      %p99 = scmp.eq.s32.totalorder %s23, 0
      %p100 = por %p98, %p99
      %s101 = ssub.s32 %s24, %s36
      %p102 = scmp.eq.s32.totalorder %s101, 0
      %s104 = sadd.s32 %s103, 1
      %s105 = scalar_select %p102, %s103, %s104
      %p108 = pneg %p102
      %p109 = scmp.eq.s32.totalorder %s17, 1
      %p110 = por %p108, %p109
      %p111 = scmp.ne.s32.totalorder %s103, %s106
      %p112 = scmp.eq.s32.totalorder %s17, 0
      %p113 = por %p111, %p112
      %p114 = scmp.ne.s32.totalorder %s103, %s106
      %p115 = scmp.eq.s32.totalorder %s22, 1
      %p116 = por %p114, %p115
      %p117 = scmp.ne.s32.totalorder %s106, %s107
      %p118 = scmp.eq.s32.totalorder %s22, 0
      %p119 = por %p117, %p118
      %p120 = scmp.ne.s32.totalorder %s106, %s107
      %p121 = scmp.eq.s32.totalorder %s23, 1
      %p122 = por %p120, %p121
      %p124 = scmp.ne.s32.totalorder %s107, %s123
      %p125 = scmp.eq.s32.totalorder %s23, 0
      %p126 = por %p124, %p125
      %p127 = scmp.le.s32.totalorder 1, %s17
      %p128 = scmp.lt.s32.totalorder %s17, 3
      %p129 = pnand %p127, %p128
      %p130 = pneg %p129
      // Predicated region
      $region9: #{tpu_custom_call.1} parent=5 // pred_check
        _
      $region10: #{tpu_custom_call.1} parent=5 // pred_check_branch
        %132 = sbr.rel (%p129) target = $region12
      $region11: #{tpu_custom_call.1} parent=5 // pred_region
        %s133 = ssub.s32 %s17, 1
      $region12: #{tpu_custom_call.1} parent=5 // pred_fallthru
        _
      %p134 = scmp.lt.s32.totalorder %s17, 2
      // Predicated region
      $region13: #{tpu_custom_call.1} parent=5 // pred_check
        %p135 = pneg %p134
      $region14: #{tpu_custom_call.1} parent=5 // pred_check_branch
        %137 = sbr.rel (%p135) target = $region16
      $region15: #{tpu_custom_call.1} parent=5 // pred_region
        // Predicated region
        $region17: #{tpu_custom_call.1} parent=15 // pred_check
          %p138 = pneg %p55
        $region18: #{tpu_custom_call.1} parent=15 // pred_check_branch
          %140 = sbr.rel (%p138) target = $region20
        $region19: #{tpu_custom_call.1} parent=15 // pred_region
          %s141 = sand.u32 %s45, 1
          %s142 = scalar_lea.sflag [#allocation6], %s141
          %s143 = sand.u32 %s45, 1
          %s144 = smul.addr %s143, 16
          %s145 = scalar_lea.vmem [#allocation5], %s144
          %s146 = sadd.s32 %s24, %s25
          %p147 = scmp.lt.s32.totalorder %s146, 0
          %s148 = scalar_select %p147, %s146, 0
          %s149 = smul.u32 2, %s148
          %s151 = ssub.s32 256, 256
          %152 = vsyncadd %s142, %s151
          %s153 = smul.addr %s149, 128
          %s154 = scalar_lea.hbm %s0, %s153
          %s155 = sshll.u32 %s145, 4
          %s156 = int_to_ptr.vmem [resolvable:$true] %s155
          %161 = dma.hbm_to_vmem [thread:$0]  %s154, 256, %s156, %s142, 128, 128, 8
        $region20: #{tpu_custom_call.1} parent=15 // pred_fallthru
          _
        // Predicated region
        $region21: #{tpu_custom_call.1} parent=15 // pred_check
          %p162 = pneg %p87
        $region22: #{tpu_custom_call.1} parent=15 // pred_check_branch
          %164 = sbr.rel (%p162) target = $region24
        $region23: #{tpu_custom_call.1} parent=15 // pred_region
          %s165 = sand.u32 %s77, 1
          %s166 = scalar_lea.sflag [#allocation9], %s165
          %s167 = sand.u32 %s77, 1
          %s168 = smul.addr %s167, 16
          %s169 = scalar_lea.vmem [#allocation8], %s168
          %s170 = sadd.s32 %s24, %s25
          %p171 = scmp.lt.s32.totalorder %s170, 0
          %s172 = scalar_select %p171, %s170, 0
          %s173 = smul.u32 2, %s172
          %s175 = ssub.s32 256, 256
          %176 = vsyncadd %s166, %s175
          %s177 = smul.addr %s173, 128
          %s178 = scalar_lea.hbm %s1, %s177
          %s179 = sshll.u32 %s169, 4
          %s180 = int_to_ptr.vmem [resolvable:$true] %s179
          %185 = dma.hbm_to_vmem [thread:$0]  %s178, 256, %s180, %s166, 128, 128, 8
        $region24: #{tpu_custom_call.1} parent=15 // pred_fallthru
          _
      $region16: #{tpu_custom_call.1} parent=5 // pred_fallthru
        _
      %p186 = scmp.le.s32.totalorder 1, %s17
      %p187 = scmp.lt.s32.totalorder %s17, 3
      %p188 = pnand %p186, %p187
      %p189 = pneg %p188
      // Predicated region
      $region25: #{tpu_custom_call.1} parent=5 // pred_check
        _
      $region26: #{tpu_custom_call.1} parent=5 // pred_check_branch
        %191 = sbr.rel (%p188) target = $region28
      $region27: #{tpu_custom_call.1} parent=5 // pred_region
        %s192 = ssub.s32 %s17, 1
        %s193 = sand.u32 %s48, 1
        %s194 = scalar_lea.sflag [#allocation6], %s193
        %s195 = sand.u32 %s48, 1
        %s196 = smul.addr %s195, 16
        %s197 = scalar_lea.vmem [#allocation5], %s196
        // Predicated region
        $region29: #{tpu_custom_call.1} parent=27 // pred_check
          %p198 = pneg %p61
        $region30: #{tpu_custom_call.1} parent=27 // pred_check_branch
          %200 = sbr.rel (%p198) target = $region32
        $region31: #{tpu_custom_call.1} parent=27 // pred_region
          %201 = dma.done %s194, 256
        $region32: #{tpu_custom_call.1} parent=27 // pred_fallthru
          _
        %s202 = sand.u32 %s80, 1
        %s203 = scalar_lea.sflag [#allocation9], %s202
        %s204 = sand.u32 %s80, 1
        %s205 = smul.addr %s204, 16
        %s206 = scalar_lea.vmem [#allocation8], %s205
        // Predicated region
        $region33: #{tpu_custom_call.1} parent=27 // pred_check
          %p207 = pneg %p93
        $region34: #{tpu_custom_call.1} parent=27 // pred_check_branch
          %209 = sbr.rel (%p207) target = $region36
        $region35: #{tpu_custom_call.1} parent=27 // pred_region
          %210 = dma.done %s203, 256
        $region36: #{tpu_custom_call.1} parent=27 // pred_fallthru
          _
        %s211 = sand.u32 %s48, 1
        %s212 = scalar_lea.sflag [#allocation6], %s211
        %s213 = sand.u32 %s48, 1
        %s214 = smul.addr %s213, 16
        %s215 = scalar_lea.vmem [#allocation5], %s214
        %p216 = pneg %p61
        %p217 = pneg %p58
        %s218 = sand.u32 %s80, 1
        %s219 = scalar_lea.sflag [#allocation9], %s218
        %s220 = sand.u32 %s80, 1
        %s221 = smul.addr %s220, 16
        %s222 = scalar_lea.vmem [#allocation8], %s221
        %p223 = pneg %p93
        %p224 = pneg %p90
        %p225 = pneg %p119
        %p226 = pneg %p116
        %s227 = sand.u32 %s106, 1
        %s228 = scalar_lea.sflag [#allocation7], %s227
        %s229 = sand.u32 %s106, 1
        %s230 = smul.addr %s229, 24
        %s231 = scalar_lea.vmem [#allocation10], %s230
        %s232 = sadd.s32 %s26, %s27
        %p233 = scmp.lt.s32.totalorder %s232, 0
        %s234 = scalar_select %p233, %s232, 0
        %s235 = smul.u32 2, %s234
        %s236 = sadd.s32 %s26, %s27
        %p237 = scmp.lt.s32.totalorder %s236, 0
        %s238 = scalar_select %p237, %s236, 0
        %s239 = smul.u32 2, %s238
        %s240 = sadd.s32 %s26, %s27
        %p241 = scmp.eq.s32.totalorder %s27, 0
        // Predicated region
        $region37: #{tpu_custom_call.1} parent=27 // pred_check
          %p242 = pneg %p241
        $region38: #{tpu_custom_call.1} parent=27 // pred_check_branch
          %244 = sbr.rel (%p242) target = $region40
        $region39: #{tpu_custom_call.1} parent=27 // pred_region
          %245 = vst [vmem:[#allocation2] sm:$0xff] 0.0
          %246 = vst [vmem:[#allocation3] sm:$0xff] 0.0
          %247 = vst [vmem:[#allocation4] sm:$0xff] 0.0
        $region40: #{tpu_custom_call.1} parent=27 // pred_fallthru
          _
        %v248 = vld [vmem:[%s197] sm:$0xff]
        %v249 = vld [vmem:[%s197 + $0x8] sm:$0xff]
        %v250 = vld [vmem:[%s206] sm:$0xff]
        %v251 = vld [vmem:[%s206 + $0x8] sm:$0xff]
        %p252 = scmp.lt.s32.totalorder %s240, 1
        // Predicated region
        $region41: #{tpu_custom_call.1} parent=27 // pred_check
          %p253 = pneg %p252
        $region42: #{tpu_custom_call.1} parent=27 // pred_check_branch
          %255 = sbr.rel (%p253) target = $region44
        $region43: #{tpu_custom_call.1} parent=27 // pred_region
          %v256 = vld [vmem:[#allocation2] sm:$0xff]
          %v257 = vmul.f32 %v250, %v248
          %v258 = vmul.f32 %v251, %v249
          %v259 = vadd.f32 %v257, %v258
          %v260 = vadd.f32 %v256, %v259
          %261 = vst [vmem:[#allocation2] sm:$0xff] %v260
          %v262 = vld [vmem:[#allocation3] sm:$0xff]
          %v263 = vadd.f32 %v248, %v249
          %v264 = vadd.f32 %v262, %v263
          %265 = vst [vmem:[#allocation3] sm:$0xff] %v264
          %v266 = vld [vmem:[#allocation4] sm:$0xff]
          %v267 = vadd.f32 %v250, %v251
          %v268 = vadd.f32 %v266, %v267
          %269 = vst [vmem:[#allocation4] sm:$0xff] %v268
        $region44: #{tpu_custom_call.1} parent=27 // pred_fallthru
          _
        %p270 = scmp.ge.s32.totalorder %s240, 1
        // Predicated region
        $region45: #{tpu_custom_call.1} parent=27 // pred_check
          %p271 = pneg %p270
        $region46: #{tpu_custom_call.1} parent=27 // pred_check_branch
          %273 = sbr.rel (%p271) target = $region48
        $region47: #{tpu_custom_call.1} parent=27 // pred_region
          %v274 = vlaneseq
          %v275 = vshrl.u32 %v274, 7
          %v276 = vadd.s32 %v275, 8
          %s277 = smul.u32 %s240, 16
          %v278 = vstv %s277
          %v279 = vadd.s32 %v278, %v275
          %v280 = vadd.s32 %v278, %v276
          %vm281 = vcmp.lt.s32.totalorder %v279, 16
          %vm282 = vcmp.lt.s32.totalorder %v280, 16
          %s283 = scalar_select %p252, 1, 0
          %v284 = vstv %s283
          %vm285 = vcmp.eq.s32.totalorder %v284, 1
          %vm286 = vmand %vm281, %vm285
          %vm287 = vmand %vm282, %vm285
          %v288 = vsel %vm286, 1, 0
          %v289 = vsel %vm287, 1, 0
          %vm290 = vcmp.eq.s32.totalorder %v288, 1
          %vm291 = vcmp.eq.s32.totalorder %v289, 1
          %v292 = vsel %vm290, %v248, 0.0
          %v293 = vsel %vm291, %v249, 0.0
          %v294 = vsel %vm290, %v250, 0.0
          %v295 = vsel %vm291, %v251, 0.0
          %v296 = vld [vmem:[#allocation2] sm:$0xff]
          %v297 = vmul.f32 %v294, %v292
          %v298 = vmul.f32 %v295, %v293
          %v299 = vadd.f32 %v297, %v298
          %v300 = vadd.f32 %v296, %v299
          %301 = vst [vmem:[#allocation2] sm:$0xff] %v300
          %v302 = vld [vmem:[#allocation3] sm:$0xff]
          %v303 = vadd.f32 %v292, %v293
          %v304 = vadd.f32 %v302, %v303
          %305 = vst [vmem:[#allocation3] sm:$0xff] %v304
          %v306 = vld [vmem:[#allocation4] sm:$0xff]
          %v307 = vadd.f32 %v294, %v295
          %v308 = vadd.f32 %v306, %v307
          %309 = vst [vmem:[#allocation4] sm:$0xff] %v308
        $region48: #{tpu_custom_call.1} parent=27 // pred_fallthru
          _
        // Predicated region
        $region49: #{tpu_custom_call.1} parent=27 // pred_check
          %p310 = pneg %p241
        $region50: #{tpu_custom_call.1} parent=27 // pred_check_branch
          %312 = sbr.rel (%p310) target = $region52
        $region51: #{tpu_custom_call.1} parent=27 // pred_region
          %v313 = vld [vmem:[#allocation2] sm:$0xff]
          %314 = vst [vmem:[%s231] sm:$0xff] %v313
          %v315 = vld [vmem:[#allocation3] sm:$0xff]
          %s316 = scalar_lea.vmem %s231, 8 [#allocation10]
          %317 = vst [vmem:[%s316] sm:$0xff] %v315
          %v318 = vld [vmem:[#allocation4] sm:$0xff]
          %s319 = scalar_lea.vmem %s231, 16 [#allocation10]
          %320 = vst [vmem:[%s319] sm:$0xff] %v318
        $region52: #{tpu_custom_call.1} parent=27 // pred_fallthru
          _
        %s321 = sand.u32 %s106, 1
        %s322 = scalar_lea.sflag [#allocation7], %s321
        %s323 = sand.u32 %s106, 1
        %s324 = smul.addr %s323, 24
        %s325 = scalar_lea.vmem [#allocation10], %s324
        // Predicated region
        $region53: #{tpu_custom_call.1} parent=27 // pred_check
          %p326 = pneg %p116
        $region54: #{tpu_custom_call.1} parent=27 // pred_check_branch
          %328 = sbr.rel (%p326) target = $region56
        $region55: #{tpu_custom_call.1} parent=27 // pred_region
          %s330 = ssub.s32 384, 384
          %331 = vsyncadd %s322, %s330
          %s332 = smul.addr %s26, 3
          %s333 = smul.addr %s332, 128
          %s334 = scalar_lea.hbm %s2, %s333
          %s335 = sshll.u32 %s325, 4
          %s336 = int_to_ptr.vmem [resolvable:$true] %s335
          %341 = dma.vmem_to_hbm [thread:$0]  %s336, 384, %s334, %s322, 128, 128, 8
        $region56: #{tpu_custom_call.1} parent=27 // pred_fallthru
          _
      $region28: #{tpu_custom_call.1} parent=5 // pred_fallthru
        _
      %p342 = scmp.le.s32.totalorder 2, %s17
      // Predicated region
      $region57: #{tpu_custom_call.1} parent=5 // pred_check
        %p343 = pneg %p342
      $region58: #{tpu_custom_call.1} parent=5 // pred_check_branch
        %345 = sbr.rel (%p343) target = $region60
      $region59: #{tpu_custom_call.1} parent=5 // pred_region
        %s346 = ssub.s32 %s17, 2
        // Predicated region
        $region61: #{tpu_custom_call.1} parent=59 // pred_check
          %p347 = pneg %p122
        $region62: #{tpu_custom_call.1} parent=59 // pred_check_branch
          %349 = sbr.rel (%p347) target = $region64
        $region63: #{tpu_custom_call.1} parent=59 // pred_region
          %s350 = sand.u32 %s107, 1
          %s351 = scalar_lea.sflag [#allocation7], %s350
          %s352 = sand.u32 %s107, 1
          %s353 = smul.addr %s352, 24
          %s354 = scalar_lea.vmem [#allocation10], %s353
          %355 = dma.done %s351, 384
        $region64: #{tpu_custom_call.1} parent=59 // pred_fallthru
          _
      $region60: #{tpu_custom_call.1} parent=5 // pred_fallthru
        _
    $region6: #{tpu_custom_call.1} parent=1 // loop_footer
      %s21 = sadd.s32 1, %s17
    $region7: #{tpu_custom_call.1} parent=1 // loop_footer_branch
      %16 = sbr.rel target = $region3
    $region8: #{tpu_custom_call.1} parent=1 // loop_exit
      _
    %356 = vsyncpa [#allocation6], 1
    %s357 = scalar_lea.sflag [#allocation6], 1
    %358 = vsyncpa %s357, 1
    %359 = vsyncpa [#allocation9], 1
    %s360 = scalar_lea.sflag [#allocation9], 1
    %361 = vsyncpa %s360, 1
    %362 = vsyncpa [#allocation7], 1
    %s363 = scalar_lea.sflag [#allocation7], 1
    %364 = vsyncpa %s363, 1

</llo_original>
